<compile_context>
chip_gen: v7x
topology: tpu7x:2x2x1
jax: 0.10.0
libtpu: 0.0.40
codegen_flags: <defaults>
</compile_context>

<pallas_src>
import jax
import jax.numpy as jnp
from jax.experimental import pallas as pl
from jax.experimental.pallas import tpu as pltpu

_LANE = 128
_BLOCK_BYTES_TARGET = 4 * 1024 * 1024   # ~4 MiB per x block (v6e sweet spot, safe on v7x)
_BLOCK_BYTES_MAX = 16 * 1024 * 1024     # hard cap for the folded 1-D path
_SMALL_BYPASS_BYTES = 1 * 1024 * 1024   # below this, plain XLA add wins
_VMEM_LIMIT_BYTES = 48 * 1024 * 1024    # 2x(x)+2x(out)+pos double-buffered fits easily


def _add_pos_kernel(x_ref, pos_ref, o_ref):
    # x_ref: (TB, TF) tile of the flattened input
    # pos_ref: (1, TF) tile of the positional embeddings (broadcast over TB)
    o_ref[...] = x_ref[...] + pos_ref[...]


def _pallas_add_2d(x_flat, pos_flat, TB, TF, itemsize, donate):
    """Grid (nF, nB): feature OUTER, batch INNER -> pos tile reused across b."""
    B, F = x_flat.shape
    nF = pl.cdiv(F, TF)
    nB = pl.cdiv(B, TB)
    kwargs = {"input_output_aliases": {0: 0}} if donate else {}
    return pl.pallas_call(
        _add_pos_kernel,
        out_shape=jax.ShapeDtypeStruct((B, F), x_flat.dtype),
        grid_spec=pltpu.PrefetchScalarGridSpec(
            num_scalar_prefetch=0,
            grid=(nF, nB),
            in_specs=[
                pl.BlockSpec((TB, TF), lambda f, b: (b, f)),
                # pos block index does not depend on b (the inner axis) -> no re-DMA
                pl.BlockSpec((1, TF), lambda f, b: (0, f)),
            ],
            out_specs=pl.BlockSpec((TB, TF), lambda f, b: (b, f)),
        ),
        compiler_params=pltpu.CompilerParams(
            dimension_semantics=("parallel", "parallel"),
            vmem_limit_bytes=_VMEM_LIMIT_BYTES,
        ),
        cost_estimate=pl.CostEstimate(
            flops=B * F,
            transcendentals=0,
            bytes_accessed=(2 * B * F + F) * itemsize,
        ),
        **kwargs,
    )(x_flat, pos_flat)


def _pallas_add_fold(x_flat, pos_flat, TF, itemsize, donate):
    """Batch folded into the lane axis: x viewed as (1, B*F); requires TF | F."""
    B, F = x_flat.shape
    x_lanes = x_flat.reshape(1, B * F)          # contiguous -> free reshape
    n_steps = (B * F) // TF
    n_pos = F // TF
    if n_pos == 1:
        pos_map = lambda i: (0, 0)              # constant -> pos fetched once
    else:
        pos_map = lambda i: (0, i % n_pos)
    kwargs = {"input_output_aliases": {0: 0}} if donate else {}
    out = pl.pallas_call(
        _add_pos_kernel,
        out_shape=jax.ShapeDtypeStruct((1, B * F), x_flat.dtype),
        grid_spec=pltpu.PrefetchScalarGridSpec(
            num_scalar_prefetch=0,
            grid=(n_steps,),
            in_specs=[
                pl.BlockSpec((1, TF), lambda i: (0, i)),
                pl.BlockSpec((1, TF), pos_map),
            ],
            out_specs=pl.BlockSpec((1, TF), lambda i: (0, i)),
        ),
        compiler_params=pltpu.CompilerParams(
            dimension_semantics=("parallel",),
            vmem_limit_bytes=_VMEM_LIMIT_BYTES,
        ),
        cost_estimate=pl.CostEstimate(
            flops=B * F,
            transcendentals=0,
            bytes_accessed=(2 * B * F + F) * itemsize,
        ),
        **kwargs,
    )(x_lanes, pos_flat)
    return out.reshape(B, F)


def feature_patch_embed(
    x,
    position_embeddings,
    *,
    min_pallas_bytes=_SMALL_BYPASS_BYTES,
    donate_x=False,
):
    """
    Args:
      x: [B, C, H, W]  (NCHW, matching the PyTorch module input)
      position_embeddings: [1, C, H*W]
      min_pallas_bytes: below this total input size, use a plain XLA add
        (launch overhead dominates at the module's real shapes).
      donate_x: alias x's HBM buffer to the output (set True only if the caller
        no longer needs x).
    Returns:
      [B, C, H*W]  (== x.flatten(2) + position_embeddings)
    """
    B, C, H, W = x.shape
    E = H * W
    F = C * E
    assert position_embeddings.shape == (1, C, E), position_embeddings.shape

    out_dtype = jnp.result_type(x.dtype, position_embeddings.dtype)
    x = x.astype(out_dtype)
    position_embeddings = position_embeddings.astype(out_dtype)
    itemsize = jnp.dtype(out_dtype).itemsize

    # ---- small-problem bypass (the module's own shapes land here) ------------
    if B * F * itemsize < min_pallas_bytes:
        return x.reshape(B, C, E) + position_embeddings

    # Lane-dense 2D views (flatten is pure layout glue, done in JAX).
    x_flat = x.reshape(B, F)
    pos_flat = position_embeddings.reshape(1, F)

    # Sublane packing per dtype: 8 rows/vreg for 4-byte, 16 for 2-byte, 32 for 1-byte.
    pack = max(8, 32 // itemsize)

    # ---- path selection -------------------------------------------------------
    # If the batch axis can't fill sublanes, fold it into the lane axis so every
    # vreg is fully packed (needs F % 128 == 0 so the pos tiling lines up).
    use_fold = (B % pack != 0) and (F % _LANE == 0)
    if use_fold:
        TF = F
        while (
            TF * itemsize > _BLOCK_BYTES_TARGET
            and TF % 2 == 0
            and (TF // 2) % _LANE == 0
        ):
            TF //= 2
        if TF * itemsize > _BLOCK_BYTES_MAX:
            use_fold = False  # couldn't find a budget-sized divisor; use 2-D path
        else:
            out = _pallas_add_fold(x_flat, pos_flat, TF, itemsize, donate_x)
            return out.reshape(B, C, E)

    # ---- 2-D tiled path -------------------------------------------------------
    if B % pack == 0:
        TB = pack
        while TB * 2 <= min(B, 128) and B % (TB * 2) == 0:
            TB *= 2
    else:
        TB = B  # block equals the full batch dim -> always legal (some sublane waste)

    # Feature tile: multiple of 128 lanes sized to ~_BLOCK_BYTES_TARGET per x block,
    # or the full feature axis if it already fits. No padding: Pallas masks any
    # ragged last tile itself.
    max_tf = max(_LANE, (_BLOCK_BYTES_TARGET // (TB * itemsize)) // _LANE * _LANE)
    TF = F if F <= max_tf else max_tf

    out = _pallas_add_2d(x_flat, pos_flat, TB, TF, itemsize, donate_x)
    return out.reshape(B, C, E)


if __name__ == "__main__":
    # Shapes consistent with the module:
    #   patch_size_h = patch_size_w = 16 -> embed_dim = 256, H = W = 16
    #   in_chans = 4                     -> num_patches = 4
    B, in_chans, H, W = 2, 4, 16, 16
    embed_dim = H * W

    key = jax.random.PRNGKey(0)
    kx, kp = jax.random.split(key)

    x = jax.random.normal(kx, (B, in_chans, H, W), dtype=jnp.float32)
    # position_embeddings ~ torch.rand => uniform [0, 1)
    position_embeddings = jax.random.uniform(
        kp, (1, in_chans, embed_dim), dtype=jnp.float32
    )
    ref = x.reshape(B, in_chans, embed_dim) + position_embeddings

    # 1) Force the Pallas path (the default would take the small-problem bypass
    #    at these tiny shapes). B=2 < 8 -> folded lane path.
    out = feature_patch_embed(x, position_embeddings, min_pallas_bytes=0)
    out = jax.block_until_ready(out)
    assert out.shape == (B, in_chans, embed_dim)
    assert jnp.allclose(out, ref, atol=1e-6, rtol=1e-6)

    # 2) Default path (small-problem bypass -> plain fused XLA add).
    out_bypass = jax.block_until_ready(feature_patch_embed(x, position_embeddings))
    assert jnp.allclose(out_bypass, ref, atol=1e-6, rtol=1e-6)

    # 3) 2-D tiled path: batch a multiple of the sublane pack, feature axis not a
    #    multiple of 128 (exercises full-dim lane blocks, no wrapper padding).
    B2, C2, H2, W2 = 8, 3, 10, 10
    x2 = jax.random.normal(kx, (B2, C2, H2, W2), dtype=jnp.float32)
    pos2 = jax.random.uniform(kp, (1, C2, H2 * W2), dtype=jnp.float32)
    out2 = jax.block_until_ready(
        feature_patch_embed(x2, pos2, min_pallas_bytes=0)
    )
    ref2 = x2.reshape(B2, C2, H2 * W2) + pos2
    assert jnp.allclose(out2, ref2, atol=1e-6, rtol=1e-6)

    print("KERNEL_OK")
</pallas_src>

<mosaic_0001>
module attributes {stable_mosaic.version = 11 : i64} {
  func.func @_add_pos_kernel(%arg0: i32, %arg1: memref<1x1024xf32, #tpu.memory_space<vmem>>, %arg2: memref<1x1024xf32, #tpu.memory_space<vmem>>, %arg3: memref<1x1024xf32, #tpu.memory_space<vmem>>) attributes {dimension_semantics = [#tpu.dimension_semantics<parallel>], iteration_bounds = array<i64: 2>, scalar_prefetch = 0 : i64, scratch_operands = 0 : i64, tpu.core_type = #tpu.core_type<tc>, window_params = [{transform_indices = @transform_0, window_bounds = array<i64: 1, 1024>}, {pipeline_mode = #tpu.pipeline_mode<synchronous>, transform_indices = @transform_1, window_bounds = array<i64: 1, 1024>}, {transform_indices = @transform_2, window_bounds = array<i64: 1, 1024>}]} {
    %c0 = arith.constant 0 : index
    %c0_0 = arith.constant 0 : index
    %0 = vector.load %arg1[%c0, %c0_0] : memref<1x1024xf32, #tpu.memory_space<vmem>>, vector<1x1024xf32>
    %c0_1 = arith.constant 0 : index
    %c0_2 = arith.constant 0 : index
    %1 = vector.load %arg2[%c0_1, %c0_2] : memref<1x1024xf32, #tpu.memory_space<vmem>>, vector<1x1024xf32>
    %2 = arith.addf %0, %1 : vector<1x1024xf32>
    %c0_3 = arith.constant 0 : index
    %c0_4 = arith.constant 0 : index
    %3 = vector.load %arg3[%c0_3, %c0_4] : memref<1x1024xf32, #tpu.memory_space<vmem>>, vector<1x1024xf32>
    tpu.vector_store %arg3[%c0_3, %c0_4], %2 {strides = array<i32>} : memref<1x1024xf32, #tpu.memory_space<vmem>>, vector<1x1024xf32>,
    return
  }
  func.func @transform_0(%arg0: i32) -> (i32, i32) {
    %c0_i32 = arith.constant 0 : i32
    %c0_i32_0 = arith.constant 0 : i32
    return %c0_i32, %arg0 : i32, i32
  }
  func.func @transform_1(%arg0: i32) -> (i32, i32) {
    %c0_i32 = arith.constant 0 : i32
    %c0_i32_0 = arith.constant 0 : i32
    %c0_i32_1 = arith.constant 0 : i32
    return %c0_i32, %c0_i32_0 : i32, i32
  }
  func.func @transform_2(%arg0: i32) -> (i32, i32) {
    %c0_i32 = arith.constant 0 : i32
    %c0_i32_0 = arith.constant 0 : i32
    return %c0_i32, %arg0 : i32, i32
  }
}

</mosaic_0001>

<llo_original>
// kernel: tpu_custom_call.1
$region0: #{tpu_custom_call.1}
  #allocation0 [shape = 'u32[]', space=smem, size = 0x4, offset = 0x4, fixed_abs, tag = 'smem constant byte address 0x4 - core index']
  #allocation1 [shape = 'u32[144,128]{1,0:T(1,128)}', space=vmem, size = 0x12000, scoped, tag = 'internal scratch']
  %s0 = inlined_call_operand.hbm [shape: f32[1,2048], index: 0, kind: input, shape index: {}]
  %s1 = inlined_call_operand.hbm [shape: f32[1,1024], index: 1, kind: input, shape index: {}]
  %s2 = inlined_call_operand.hbm [shape: f32[1,2048], index: 2, kind: output, shape index: {}]
  %s3 = sld [smem:[#allocation0]]
  $region49: #{tpu_custom_call.1} parent=0
    _
  %s5 = ssub.s32 1, %s3
  %s6 = scalar_select 0, %s5, %s3
  $region1: #{tpu_custom_call.1} parent=0
    #allocation2 [shape = 'u8[8192]{0}', space=vmem, size = 0x2000, scoped, tag = 'input window, operand 0']
    #allocation3 [shape = 's32[2]{0}', space=sflag, size = 0x8, scoped, tag = 'scoped memory for tpu_custom_call.1']
    #allocation4 [shape = 's32[2]{0}', space=sflag, size = 0x8, scoped, tag = 'scoped memory for tpu_custom_call.1']
    #allocation5 [shape = 'u8[4096]{0}', space=vmem, size = 0x1000, scoped, tag = 'input window, operand 1, single buffered']
    #allocation6 [shape = 's32[1]{0}', space=sflag, size = 0x4, scoped, tag = 'scoped memory for tpu_custom_call.1']
    #allocation7 [shape = 'u8[8192]{0}', space=vmem, size = 0x2000, scoped, tag = 'output window, operand 0']
    %7 = vsyncpa [#allocation3], 0
    %s8 = scalar_lea.sflag [#allocation3], 1
    %9 = vsyncpa %s8, 0
    %10 = vsyncpa [#allocation6], 0
    %11 = vsyncpa [#allocation4], 0
    %s12 = scalar_lea.sflag [#allocation4], 1
    %13 = vsyncpa %s12, 0
    loop: start=0, step=1, limit=4
    $region2: #{tpu_custom_call.1} parent=1 // loop_pre_header
      _
    $region3: #{tpu_custom_call.1} parent=1 // loop_header
      %s15 = sphi 0, %s19
      %p16 = scmp.ge.s32.totalorder %s15, 4
      %s25 = sphi 0, %s27
      %s28 = sphi 0, %s25
      %s29 = sphi 0, %s28
      %s45 = sphi 0, %s29
      %s49 = sphi 0, %s49
      %s51 = sphi 0, %s49
      %s52 = sphi 0, %s51
      %s66 = sphi 0, %s52
      %s72 = sphi 0, %s74
      %s75 = sphi 0, %s72
      %s76 = sphi 0, %s75
      %s92 = sphi 0, %s76
    $region4: #{tpu_custom_call.1} parent=1 // loop_header_branch
      %18 = sbr.rel (%p16) target = $region8
    $region5: #{tpu_custom_call.1} parent=1 // loop_body
      %s20 = ssub.s32 %s15, 1
      %s21 = ssub.s32 %s15, 2
      %s22 = sadd.s32 %s15, 1
      %s23 = ssub.s32 %s15, %s22
      %p24 = scmp.eq.s32.totalorder %s23, 0
      %s26 = sadd.s32 %s25, 1
      %s27 = scalar_select %p24, %s25, %s26
      %p30 = pneg %p24
      %p31 = scmp.eq.s32.totalorder %s15, 1
      %p32 = por %p30, %p31
      %p33 = scmp.ne.s32.totalorder %s25, %s28
      %p34 = scmp.eq.s32.totalorder %s15, 0
      %p35 = por %p33, %p34
      %p36 = scmp.ne.s32.totalorder %s25, %s28
      %p37 = scmp.eq.s32.totalorder %s20, 1
      %p38 = por %p36, %p37
      %p39 = scmp.ne.s32.totalorder %s28, %s29
      %p40 = scmp.eq.s32.totalorder %s20, 0
      %p41 = por %p39, %p40
      %p42 = scmp.ne.s32.totalorder %s28, %s29
      %p43 = scmp.eq.s32.totalorder %s21, 1
      %p44 = por %p42, %p43
      %p46 = scmp.ne.s32.totalorder %s29, %s45
      %p47 = scmp.eq.s32.totalorder %s21, 0
      %p48 = por %p46, %p47
      %s50 = sadd.s32 %s49, 1
      %p53 = scmp.eq.s32.totalorder %s15, 1
      %p54 = scmp.ne.s32.totalorder %s49, %s51
      %p55 = scmp.eq.s32.totalorder %s15, 0
      %p56 = por %p54, %p55
      %p57 = scmp.ne.s32.totalorder %s49, %s51
      %p58 = scmp.eq.s32.totalorder %s20, 1
      %p59 = por %p57, %p58
      %p60 = scmp.ne.s32.totalorder %s51, %s52
      %p61 = scmp.eq.s32.totalorder %s20, 0
      %p62 = por %p60, %p61
      %p63 = scmp.ne.s32.totalorder %s51, %s52
      %p64 = scmp.eq.s32.totalorder %s21, 1
      %p65 = por %p63, %p64
      %p67 = scmp.ne.s32.totalorder %s52, %s66
      %p68 = scmp.eq.s32.totalorder %s21, 0
      %p69 = por %p67, %p68
      %s70 = ssub.s32 %s15, %s22
      %p71 = scmp.eq.s32.totalorder %s70, 0
      %s73 = sadd.s32 %s72, 1
      %s74 = scalar_select %p71, %s72, %s73
      %p77 = pneg %p71
      %p78 = scmp.eq.s32.totalorder %s15, 1
      %p79 = por %p77, %p78
      %p80 = scmp.ne.s32.totalorder %s72, %s75
      %p81 = scmp.eq.s32.totalorder %s15, 0
      %p82 = por %p80, %p81
      %p83 = scmp.ne.s32.totalorder %s72, %s75
      %p84 = scmp.eq.s32.totalorder %s20, 1
      %p85 = por %p83, %p84
      %p86 = scmp.ne.s32.totalorder %s75, %s76
      %p87 = scmp.eq.s32.totalorder %s20, 0
      %p88 = por %p86, %p87
      %p89 = scmp.ne.s32.totalorder %s75, %s76
      %p90 = scmp.eq.s32.totalorder %s21, 1
      %p91 = por %p89, %p90
      %p93 = scmp.ne.s32.totalorder %s76, %s92
      %p94 = scmp.eq.s32.totalorder %s21, 0
      %p95 = por %p93, %p94
      %p96 = scmp.le.s32.totalorder 1, %s15
      %p97 = scmp.lt.s32.totalorder %s15, 3
      %p98 = pnand %p96, %p97
      %p99 = pneg %p98
      // Predicated region
      $region9: #{tpu_custom_call.1} parent=5 // pred_check
        _
      $region10: #{tpu_custom_call.1} parent=5 // pred_check_branch
        %101 = sbr.rel (%p98) target = $region12
      $region11: #{tpu_custom_call.1} parent=5 // pred_region
        %s102 = ssub.s32 %s15, 1
        // Predicated region
        $region13: #{tpu_custom_call.1} parent=11 // pred_check
          %p103 = pneg %p62
        $region14: #{tpu_custom_call.1} parent=11 // pred_check_branch
          %105 = sbr.rel (%p103) target = $region16
        $region15: #{tpu_custom_call.1} parent=11 // pred_region
          %s107 = ssub.s32 128, 128
          %108 = vsyncadd [#allocation6], %s107
          %s110 = sshll.u32 [#allocation5], 4
          %s111 = int_to_ptr.vmem [resolvable:$true] %s110
          %113 = dma.hbm_to_vmem [thread:$0]  %s1, 128, %s111, [#allocation6]
        $region16: #{tpu_custom_call.1} parent=11 // pred_fallthru
          _
      $region12: #{tpu_custom_call.1} parent=5 // pred_fallthru
        _
      %p114 = scmp.lt.s32.totalorder %s15, 2
      // Predicated region
      $region17: #{tpu_custom_call.1} parent=5 // pred_check
        %p115 = pneg %p114
      $region18: #{tpu_custom_call.1} parent=5 // pred_check_branch
        %117 = sbr.rel (%p115) target = $region20
      $region19: #{tpu_custom_call.1} parent=5 // pred_region
        // Predicated region
        $region21: #{tpu_custom_call.1} parent=19 // pred_check
          %p118 = pneg %p35
        $region22: #{tpu_custom_call.1} parent=19 // pred_check_branch
          %120 = sbr.rel (%p118) target = $region24
        $region23: #{tpu_custom_call.1} parent=19 // pred_region
          %s121 = sand.u32 %s25, 1
          %s122 = scalar_lea.sflag [#allocation3], %s121
          %s123 = sand.u32 %s25, 1
          %s124 = smul.addr %s123, 8
          %s125 = scalar_lea.vmem [#allocation2], %s124
          %s126 = smul.u32 8, %s15
          %s128 = ssub.s32 128, 128
          %129 = vsyncadd %s122, %s128
          %s130 = smul.addr %s126, 16
          %s131 = scalar_lea.hbm %s0, %s130
          %s133 = sshll.u32 %s125, 4
          %s134 = int_to_ptr.vmem [resolvable:$true] %s133
          %136 = dma.hbm_to_vmem [thread:$0]  %s131, 128, %s134, %s122
        $region24: #{tpu_custom_call.1} parent=19 // pred_fallthru
          _
      $region20: #{tpu_custom_call.1} parent=5 // pred_fallthru
        _
      %p137 = scmp.le.s32.totalorder 1, %s15
      %p138 = scmp.lt.s32.totalorder %s15, 3
      %p139 = pnand %p137, %p138
      %p140 = pneg %p139
      // Predicated region
      $region25: #{tpu_custom_call.1} parent=5 // pred_check
        _
      $region26: #{tpu_custom_call.1} parent=5 // pred_check_branch
        %142 = sbr.rel (%p139) target = $region28
      $region27: #{tpu_custom_call.1} parent=5 // pred_region
        %s143 = ssub.s32 %s15, 1
        %s144 = sand.u32 %s28, 1
        %s145 = scalar_lea.sflag [#allocation3], %s144
        %s146 = sand.u32 %s28, 1
        %s147 = smul.addr %s146, 8
        %s148 = scalar_lea.vmem [#allocation2], %s147
        // Predicated region
        $region29: #{tpu_custom_call.1} parent=27 // pred_check
          %p149 = pneg %p41
        $region30: #{tpu_custom_call.1} parent=27 // pred_check_branch
          %151 = sbr.rel (%p149) target = $region32
        $region31: #{tpu_custom_call.1} parent=27 // pred_region
          %152 = dma.done %s145, 128
        $region32: #{tpu_custom_call.1} parent=27 // pred_fallthru
          _
        // Predicated region
        $region33: #{tpu_custom_call.1} parent=27 // pred_check
          %p153 = pneg %p62
        $region34: #{tpu_custom_call.1} parent=27 // pred_check_branch
          %155 = sbr.rel (%p153) target = $region36
        $region35: #{tpu_custom_call.1} parent=27 // pred_region
          %156 = dma.done [#allocation6], 128
        $region36: #{tpu_custom_call.1} parent=27 // pred_fallthru
          _
        %s157 = sand.u32 %s28, 1
        %s158 = scalar_lea.sflag [#allocation3], %s157
        %s159 = sand.u32 %s28, 1
        %s160 = smul.addr %s159, 8
        %s161 = scalar_lea.vmem [#allocation2], %s160
        %p162 = pneg %p41
        %p163 = pneg %p38
        %p164 = pneg %p62
        %p165 = pneg %p59
        %p166 = pneg %p88
        %p167 = pneg %p85
        %s168 = sand.u32 %s75, 1
        %s169 = scalar_lea.sflag [#allocation4], %s168
        %s170 = sand.u32 %s75, 1
        %s171 = smul.addr %s170, 8
        %s172 = scalar_lea.vmem [#allocation7], %s171
        %s173 = smul.u32 8, %s20
        %s174 = smul.u32 8, %s20
        %v175 = vld [vmem:[%s148] sm:$0xff]
        %v176 = vld [vmem:[#allocation5] sm:$0xff]
        %v177 = vadd.f32 %v175, %v176
        %178 = vst [vmem:[%s172] sm:$0xff] %v177
        %s179 = sand.u32 %s75, 1
        %s180 = scalar_lea.sflag [#allocation4], %s179
        %s181 = sand.u32 %s75, 1
        %s182 = smul.addr %s181, 8
        %s183 = scalar_lea.vmem [#allocation7], %s182
        // Predicated region
        $region37: #{tpu_custom_call.1} parent=27 // pred_check
          %p184 = pneg %p85
        $region38: #{tpu_custom_call.1} parent=27 // pred_check_branch
          %186 = sbr.rel (%p184) target = $region40
        $region39: #{tpu_custom_call.1} parent=27 // pred_region
          %s187 = smul.u32 8, %s20
          %s189 = ssub.s32 128, 128
          %190 = vsyncadd %s180, %s189
          %s191 = smul.addr %s187, 16
          %s192 = scalar_lea.hbm %s2, %s191
          %s194 = sshll.u32 %s183, 4
          %s195 = int_to_ptr.vmem [resolvable:$true] %s194
          %197 = dma.vmem_to_hbm [thread:$0]  %s195, 128, %s192, %s180
        $region40: #{tpu_custom_call.1} parent=27 // pred_fallthru
          _
      $region28: #{tpu_custom_call.1} parent=5 // pred_fallthru
        _
      %p198 = scmp.le.s32.totalorder 2, %s15
      // Predicated region
      $region41: #{tpu_custom_call.1} parent=5 // pred_check
        %p199 = pneg %p198
      $region42: #{tpu_custom_call.1} parent=5 // pred_check_branch
        %201 = sbr.rel (%p199) target = $region44
      $region43: #{tpu_custom_call.1} parent=5 // pred_region
        %s202 = ssub.s32 %s15, 2
        // Predicated region
        $region45: #{tpu_custom_call.1} parent=43 // pred_check
          %p203 = pneg %p91
        $region46: #{tpu_custom_call.1} parent=43 // pred_check_branch
          %205 = sbr.rel (%p203) target = $region48
        $region47: #{tpu_custom_call.1} parent=43 // pred_region
          %s206 = sand.u32 %s76, 1
          %s207 = scalar_lea.sflag [#allocation4], %s206
          %s208 = sand.u32 %s76, 1
          %s209 = smul.addr %s208, 8
          %s210 = scalar_lea.vmem [#allocation7], %s209
          %211 = dma.done %s207, 128
        $region48: #{tpu_custom_call.1} parent=43 // pred_fallthru
          _
      $region44: #{tpu_custom_call.1} parent=5 // pred_fallthru
        _
    $region6: #{tpu_custom_call.1} parent=1 // loop_footer
      %s19 = sadd.s32 1, %s15
    $region7: #{tpu_custom_call.1} parent=1 // loop_footer_branch
      %14 = sbr.rel target = $region3
    $region8: #{tpu_custom_call.1} parent=1 // loop_exit
      _
    %212 = vsyncpa [#allocation3], 1
    %s213 = scalar_lea.sflag [#allocation3], 1
    %214 = vsyncpa %s213, 1
    %215 = vsyncpa [#allocation6], 1
    %216 = vsyncpa [#allocation4], 1
    %s217 = scalar_lea.sflag [#allocation4], 1
    %218 = vsyncpa %s217, 1

</llo_original>
